<compile_context>
chip_gen: v7x
topology: tpu7x:2x2x1
jax: 0.10.0
libtpu: 0.0.40
codegen_flags: <defaults>
</compile_context>

<pallas_src>
import jax
import jax.numpy as jnp
from jax import lax
from jax.experimental import pallas as pl
from jax.experimental.pallas import tpu as pltpu


NEG_SLOPE = 0.01      # PyTorch nn.LeakyReLU default
PACK = 4              # batch rows packed along the lane axis (32 -> 128 lanes)
SUB_ROWS = 128        # packed rows per inner sub-chunk (= 512 original rows)


def _leaky_relu(h):
    return jnp.where(h > 0, h, NEG_SLOPE * h)


def ssffcn_kernel(x_ref,
                  w1_ref, b1_ref,
                  w2_ref, b2_ref,
                  w3_ref, b3_ref,
                  w4_ref, b4_ref,
                  w5_ref, b5_ref,
                  o_ref):
    """One batch tile of the 5-layer MLP in the lane-packed layout."""
    mm_dtype = w1_ref.dtype                 # bf16 (default) or f32 MXU operands
    n_sub = x_ref.shape[0] // SUB_ROWS      # static

    def layer(h, w_ref, b_ref, act):
        # MXU matmul with f32 accumulation; bias add + LeakyReLU stay in f32.
        y = jnp.dot(h.astype(mm_dtype), w_ref[...],
                    preferred_element_type=jnp.float32) + b_ref[...]
        return _leaky_relu(y) if act else y

    def body(s, carry):
        r0 = pl.multiple_of(s * SUB_ROWS, SUB_ROWS)
        h = x_ref[pl.ds(r0, SUB_ROWS), :]
        h = layer(h, w1_ref, b1_ref, True)
        h = layer(h, w2_ref, b2_ref, True)
        h = layer(h, w3_ref, b3_ref, True)
        h = layer(h, w4_ref, b4_ref, True)
        h = layer(h, w5_ref, b5_ref, False)
        o_ref[pl.ds(r0, SUB_ROWS), :] = h.astype(o_ref.dtype)
        return carry

    # Sub-chunking keeps each (SUB_ROWS, 128) activation in vregs across all 5
    # layers.  Unroll only by a divisor of the trip count (scheduler visibility
    # without relying on remainder handling).
    unroll = 4 if n_sub % 4 == 0 else (2 if n_sub % 2 == 0 else 1)
    lax.fori_loop(0, n_sub, body, 0, unroll=unroll)


def _block_diag(w, p):
    """Block-diagonal stack of `p` copies of w:  (i, o) -> (p*i, p*o)."""
    i_dim, o_dim = w.shape
    out = jnp.zeros((p * i_dim, p * o_dim), w.dtype)
    for k in range(p):
        out = out.at[k * i_dim:(k + 1) * i_dim, k * o_dim:(k + 1) * o_dim].set(w)
    return out


def _round_up(a, m):
    return -(-a // m) * m


def ssffcn_forward(x, params, *, block_rows=8192, matmul_dtype=jnp.bfloat16):
    """Forward pass of SSFFcn.

    x:       (N, 2L+1) float32.
    params:  list of 5 (W_t, b) pairs, W_t pre-transposed to (in, out)
             (PyTorch stores (out, in); we compute y = x @ W_t + b).
    block_rows:   original batch rows per grid step (tune for large N).
    matmul_dtype: MXU operand dtype. bf16 default (v6e/v7x native); pass
                  jnp.float32 on v5e or for bit-exact f32 semantics.
    """
    N, in_dim = x.shape
    out_dim = params[-1][0].shape[1]

    # ---- wrapper-side packing: block-diagonal, lane-dense weights -----------
    packed_wb = []
    for (w, b) in params:
        w_bd = _block_diag(w.astype(jnp.float32), PACK).astype(matmul_dtype)
        b_bd = jnp.tile(b.astype(jnp.float32), PACK).reshape(1, -1)
        packed_wb.append((w_bd, b_bd))

    # ---- batch padding / packed geometry ------------------------------------
    np_rows = _round_up(N, PACK) // PACK                   # packed rows needed
    np_min = _round_up(np_rows, SUB_ROWS)                  # sub-chunk aligned
    tm_p = max(SUB_ROWS, (block_rows // PACK) // SUB_ROWS * SUB_ROWS)
    tm_p = min(tm_p, np_min)                               # don't exceed batch
    np_pad = _round_up(np_min, tm_p)
    n_pad = np_pad * PACK

    if n_pad == N:
        x_pad = x
    else:
        x_pad = jnp.zeros((n_pad, in_dim), x.dtype).at[:N].set(x)
    x_packed = x_pad.reshape(np_pad, PACK * in_dim)        # (Np, 4*(2L+1))

    # ---- pallas_call ---------------------------------------------------------
    flat_args, wb_specs = [], []
    for (w_bd, b_bd) in packed_wb:
        flat_args += [w_bd, b_bd]
        # Constant index_map: fetched once; copy skipped on every revisit.
        wb_specs += [pl.BlockSpec(w_bd.shape, lambda i: (0, 0)),
                     pl.BlockSpec(b_bd.shape, lambda i: (0, 0))]

    grid = (np_pad // tm_p,)
    out_packed = pl.pallas_call(
        ssffcn_kernel,
        out_shape=jax.ShapeDtypeStruct((np_pad, PACK * out_dim), x.dtype),
        grid_spec=pltpu.PrefetchScalarGridSpec(
            num_scalar_prefetch=0,
            grid=grid,
            in_specs=[pl.BlockSpec((tm_p, PACK * in_dim), lambda i: (i, 0))]
                     + wb_specs,
            out_specs=pl.BlockSpec((tm_p, PACK * out_dim), lambda i: (i, 0)),
        ),
        compiler_params=pltpu.CompilerParams(
            dimension_semantics=("parallel",)),   # v7x: shard grid over 2 TCs
    )(x_packed, *flat_args)

    y = out_packed.reshape(np_pad * PACK, out_dim)
    return y if n_pad == N else y[:N]


def init_params(key, L, out_dim):
    """PyTorch-Linear-shaped init; weights stored pre-transposed as (in, out)."""
    dims = [(2 * L + 1, 2 * L)] + [(2 * L, 2 * L)] * 3 + [(2 * L, out_dim)]
    params = []
    for (i_dim, o_dim) in dims:
        key, kw, kb = jax.random.split(key, 3)
        bound = 1.0 / jnp.sqrt(jnp.float32(i_dim))
        w_t = jax.random.uniform(kw, (i_dim, o_dim), jnp.float32, -bound, bound)
        b = jax.random.uniform(kb, (o_dim,), jnp.float32, -bound, bound)
        params.append((w_t, b))
    return params


def ssffcn_reference(x, params):
    h = x
    for idx, (w, b) in enumerate(params):
        h = h @ w + b
        if idx < len(params) - 1:
            h = jnp.where(h > 0, h, NEG_SLOPE * h)
    return h


if __name__ == "__main__":
    L = 16            # in_features = 33, hidden = 32
    out_dim = 8

    key = jax.random.PRNGKey(0)
    key, kx1, kx2, kx3 = jax.random.split(key, 4)
    params = init_params(key, L, out_dim)

    # 1) Small batch, exact-f32 matmul path (single grid step, single sub-chunk).
    x1 = jax.random.normal(kx1, (64, 2 * L + 1), dtype=jnp.float32)
    y1 = jax.block_until_ready(ssffcn_forward(x1, params, matmul_dtype=jnp.float32))
    assert y1.shape == (64, out_dim)
    assert jnp.allclose(y1, ssffcn_reference(x1, params), atol=1e-4, rtol=1e-4)

    # 2) Default fast path (bf16 MXU operands, f32 accumulation / elementwise).
    y1b = jax.block_until_ready(ssffcn_forward(x1, params))
    assert jnp.allclose(y1b, ssffcn_reference(x1, params), atol=1e-1, rtol=1e-1)

    # 3) Ragged batch (exercises zero-padding + multi-sub-chunk inner loop).
    x2 = jax.random.normal(kx2, (1000, 2 * L + 1), dtype=jnp.float32)
    y2 = jax.block_until_ready(ssffcn_forward(x2, params, matmul_dtype=jnp.float32))
    assert y2.shape == (1000, out_dim)
    assert jnp.allclose(y2, ssffcn_reference(x2, params), atol=1e-4, rtol=1e-4)

    # 4) Multi-grid-step path (resident weights across revisits, grid=2).
    x3 = jax.random.normal(kx3, (4096, 2 * L + 1), dtype=jnp.float32)
    y3 = jax.block_until_ready(
        ssffcn_forward(x3, params, block_rows=2048, matmul_dtype=jnp.float32))
    assert y3.shape == (4096, out_dim)
    assert jnp.allclose(y3, ssffcn_reference(x3, params), atol=1e-4, rtol=1e-4)

    print("KERNEL_OK")
</pallas_src>

<mosaic_0001>
module attributes {stable_mosaic.version = 11 : i64} {
  func.func @ssffcn_kernel(%arg0: i32, %arg1: memref<128x132xf32, #tpu.memory_space<vmem>>, %arg2: memref<132x128xf32, #tpu.memory_space<vmem>>, %arg3: memref<1x128xf32, #tpu.memory_space<vmem>>, %arg4: memref<128x128xf32, #tpu.memory_space<vmem>>, %arg5: memref<1x128xf32, #tpu.memory_space<vmem>>, %arg6: memref<128x128xf32, #tpu.memory_space<vmem>>, %arg7: memref<1x128xf32, #tpu.memory_space<vmem>>, %arg8: memref<128x128xf32, #tpu.memory_space<vmem>>, %arg9: memref<1x128xf32, #tpu.memory_space<vmem>>, %arg10: memref<128x32xf32, #tpu.memory_space<vmem>>, %arg11: memref<1x32xf32, #tpu.memory_space<vmem>>, %arg12: memref<128x32xf32, #tpu.memory_space<vmem>>) attributes {dimension_semantics = [#tpu.dimension_semantics<parallel>], iteration_bounds = array<i64: 1>, scalar_prefetch = 0 : i64, scratch_operands = 0 : i64, tpu.core_type = #tpu.core_type<tc>, window_params = [{transform_indices = @transform_0, window_bounds = array<i64: 128, 132>}, {pipeline_mode = #tpu.pipeline_mode<synchronous>, transform_indices = @transform_1, window_bounds = array<i64: 132, 128>}, {pipeline_mode = #tpu.pipeline_mode<synchronous>, transform_indices = @transform_2, window_bounds = array<i64: 1, 128>}, {pipeline_mode = #tpu.pipeline_mode<synchronous>, transform_indices = @transform_3, window_bounds = array<i64: 128, 128>}, {pipeline_mode = #tpu.pipeline_mode<synchronous>, transform_indices = @transform_4, window_bounds = array<i64: 1, 128>}, {pipeline_mode = #tpu.pipeline_mode<synchronous>, transform_indices = @transform_5, window_bounds = array<i64: 128, 128>}, {pipeline_mode = #tpu.pipeline_mode<synchronous>, transform_indices = @transform_6, window_bounds = array<i64: 1, 128>}, {pipeline_mode = #tpu.pipeline_mode<synchronous>, transform_indices = @transform_7, window_bounds = array<i64: 128, 128>}, {pipeline_mode = #tpu.pipeline_mode<synchronous>, transform_indices = @transform_8, window_bounds = array<i64: 1, 128>}, {pipeline_mode = #tpu.pipeline_mode<synchronous>, transform_indices = @transform_9, window_bounds = array<i64: 128, 32>}, {pipeline_mode = #tpu.pipeline_mode<synchronous>, transform_indices = @transform_10, window_bounds = array<i64: 1, 32>}, {transform_indices = @transform_11, window_bounds = array<i64: 128, 32>}]} {
    %c0_i32 = arith.constant 0 : i32
    %c128_i32 = arith.constant 128 : i32
    %0 = arith.muli %c0_i32, %c128_i32 : i32
    %1 = tpu.assume_multiple %0, 128 : i32
    %2 = arith.index_cast %1 : i32 to index
    %c0 = arith.constant 0 : index
    %3 = vector.load %arg1[%2, %c0] : memref<128x132xf32, #tpu.memory_space<vmem>>, vector<128x132xf32>
    %c0_0 = arith.constant 0 : index
    %c0_1 = arith.constant 0 : index
    %4 = vector.load %arg2[%c0_0, %c0_1] : memref<132x128xf32, #tpu.memory_space<vmem>>, vector<132x128xf32>
    %cst = arith.constant dense<0.000000e+00> : vector<128x128xf32>
    %5 = tpu.matmul %3, %4, %cst {dimension_numbers = #tpu.dot_dimension_numbers<[1], [0], [0], [1], [0, 0, 1, 1], [], []>} : vector<128x132xf32>, vector<132x128xf32>, vector<128x128xf32> -> vector<128x128xf32>
    %c0_2 = arith.constant 0 : index
    %c0_3 = arith.constant 0 : index
    %6 = vector.load %arg3[%c0_2, %c0_3] : memref<1x128xf32, #tpu.memory_space<vmem>>, vector<1x128xf32>
    %7 = vector.broadcast %6 : vector<1x128xf32> to vector<128x128xf32>
    %8 = arith.addf %5, %7 : vector<128x128xf32>
    %cst_4 = arith.constant 0.000000e+00 : f32
    %9 = vector.broadcast %cst_4 : f32 to vector<128x128xf32>
    %10 = arith.cmpf ogt, %8, %9 : vector<128x128xf32>
    %cst_5 = arith.constant 0.00999999977 : f32
    %11 = vector.broadcast %cst_5 : f32 to vector<128x128xf32>
    %12 = arith.mulf %11, %8 : vector<128x128xf32>
    %13 = arith.select %10, %8, %12 : vector<128x128xi1>, vector<128x128xf32>
    %c0_6 = arith.constant 0 : index
    %c0_7 = arith.constant 0 : index
    %14 = vector.load %arg4[%c0_6, %c0_7] : memref<128x128xf32, #tpu.memory_space<vmem>>, vector<128x128xf32>
    %cst_8 = arith.constant dense<0.000000e+00> : vector<128x128xf32>
    %15 = tpu.matmul %13, %14, %cst_8 {dimension_numbers = #tpu.dot_dimension_numbers<[1], [0], [0], [1], [0, 0, 1, 1], [], []>} : vector<128x128xf32>, vector<128x128xf32>, vector<128x128xf32> -> vector<128x128xf32>
    %c0_9 = arith.constant 0 : index
    %c0_10 = arith.constant 0 : index
    %16 = vector.load %arg5[%c0_9, %c0_10] : memref<1x128xf32, #tpu.memory_space<vmem>>, vector<1x128xf32>
    %17 = vector.broadcast %16 : vector<1x128xf32> to vector<128x128xf32>
    %18 = arith.addf %15, %17 : vector<128x128xf32>
    %cst_11 = arith.constant 0.000000e+00 : f32
    %19 = vector.broadcast %cst_11 : f32 to vector<128x128xf32>
    %20 = arith.cmpf ogt, %18, %19 : vector<128x128xf32>
    %cst_12 = arith.constant 0.00999999977 : f32
    %21 = vector.broadcast %cst_12 : f32 to vector<128x128xf32>
    %22 = arith.mulf %21, %18 : vector<128x128xf32>
    %23 = arith.select %20, %18, %22 : vector<128x128xi1>, vector<128x128xf32>
    %c0_13 = arith.constant 0 : index
    %c0_14 = arith.constant 0 : index
    %24 = vector.load %arg6[%c0_13, %c0_14] : memref<128x128xf32, #tpu.memory_space<vmem>>, vector<128x128xf32>
    %cst_15 = arith.constant dense<0.000000e+00> : vector<128x128xf32>
    %25 = tpu.matmul %23, %24, %cst_15 {dimension_numbers = #tpu.dot_dimension_numbers<[1], [0], [0], [1], [0, 0, 1, 1], [], []>} : vector<128x128xf32>, vector<128x128xf32>, vector<128x128xf32> -> vector<128x128xf32>
    %c0_16 = arith.constant 0 : index
    %c0_17 = arith.constant 0 : index
    %26 = vector.load %arg7[%c0_16, %c0_17] : memref<1x128xf32, #tpu.memory_space<vmem>>, vector<1x128xf32>
    %27 = vector.broadcast %26 : vector<1x128xf32> to vector<128x128xf32>
    %28 = arith.addf %25, %27 : vector<128x128xf32>
    %cst_18 = arith.constant 0.000000e+00 : f32
    %29 = vector.broadcast %cst_18 : f32 to vector<128x128xf32>
    %30 = arith.cmpf ogt, %28, %29 : vector<128x128xf32>
    %cst_19 = arith.constant 0.00999999977 : f32
    %31 = vector.broadcast %cst_19 : f32 to vector<128x128xf32>
    %32 = arith.mulf %31, %28 : vector<128x128xf32>
    %33 = arith.select %30, %28, %32 : vector<128x128xi1>, vector<128x128xf32>
    %c0_20 = arith.constant 0 : index
    %c0_21 = arith.constant 0 : index
    %34 = vector.load %arg8[%c0_20, %c0_21] : memref<128x128xf32, #tpu.memory_space<vmem>>, vector<128x128xf32>
    %cst_22 = arith.constant dense<0.000000e+00> : vector<128x128xf32>
    %35 = tpu.matmul %33, %34, %cst_22 {dimension_numbers = #tpu.dot_dimension_numbers<[1], [0], [0], [1], [0, 0, 1, 1], [], []>} : vector<128x128xf32>, vector<128x128xf32>, vector<128x128xf32> -> vector<128x128xf32>
    %c0_23 = arith.constant 0 : index
    %c0_24 = arith.constant 0 : index
    %36 = vector.load %arg9[%c0_23, %c0_24] : memref<1x128xf32, #tpu.memory_space<vmem>>, vector<1x128xf32>
    %37 = vector.broadcast %36 : vector<1x128xf32> to vector<128x128xf32>
    %38 = arith.addf %35, %37 : vector<128x128xf32>
    %cst_25 = arith.constant 0.000000e+00 : f32
    %39 = vector.broadcast %cst_25 : f32 to vector<128x128xf32>
    %40 = arith.cmpf ogt, %38, %39 : vector<128x128xf32>
    %cst_26 = arith.constant 0.00999999977 : f32
    %41 = vector.broadcast %cst_26 : f32 to vector<128x128xf32>
    %42 = arith.mulf %41, %38 : vector<128x128xf32>
    %43 = arith.select %40, %38, %42 : vector<128x128xi1>, vector<128x128xf32>
    %c0_27 = arith.constant 0 : index
    %c0_28 = arith.constant 0 : index
    %44 = vector.load %arg10[%c0_27, %c0_28] : memref<128x32xf32, #tpu.memory_space<vmem>>, vector<128x32xf32>
    %cst_29 = arith.constant dense<0.000000e+00> : vector<128x32xf32>
    %45 = tpu.matmul %43, %44, %cst_29 {dimension_numbers = #tpu.dot_dimension_numbers<[1], [0], [0], [1], [0, 0, 1, 1], [], []>} : vector<128x128xf32>, vector<128x32xf32>, vector<128x32xf32> -> vector<128x32xf32>
    %c0_30 = arith.constant 0 : index
    %c0_31 = arith.constant 0 : index
    %46 = vector.load %arg11[%c0_30, %c0_31] : memref<1x32xf32, #tpu.memory_space<vmem>>, vector<1x32xf32>
    %47 = vector.broadcast %46 : vector<1x32xf32> to vector<128x32xf32>
    %48 = arith.addf %45, %47 : vector<128x32xf32>
    %49 = arith.index_cast %1 : i32 to index
    %c0_32 = arith.constant 0 : index
    %50 = vector.load %arg12[%49, %c0_32] : memref<128x32xf32, #tpu.memory_space<vmem>>, vector<128x32xf32>
    tpu.vector_store %arg12[%49, %c0_32], %48 {strides = array<i32>} : memref<128x32xf32, #tpu.memory_space<vmem>>, vector<128x32xf32>,
    %c1_i32 = arith.constant 1 : i32
    return
  }
  func.func @transform_0(%arg0: i32) -> (i32, i32) {
    %c0_i32 = arith.constant 0 : i32
    %c0_i32_0 = arith.constant 0 : i32
    return %arg0, %c0_i32 : i32, i32
  }
  func.func @transform_1(%arg0: i32) -> (i32, i32) {
    %c0_i32 = arith.constant 0 : i32
    %c0_i32_0 = arith.constant 0 : i32
    %c0_i32_1 = arith.constant 0 : i32
    return %c0_i32, %c0_i32_0 : i32, i32
  }
  func.func @transform_2(%arg0: i32) -> (i32, i32) {
    %c0_i32 = arith.constant 0 : i32
    %c0_i32_0 = arith.constant 0 : i32
    %c0_i32_1 = arith.constant 0 : i32
    return %c0_i32, %c0_i32_0 : i32, i32
  }
  func.func @transform_3(%arg0: i32) -> (i32, i32) {
    %c0_i32 = arith.constant 0 : i32
    %c0_i32_0 = arith.constant 0 : i32
    %c0_i32_1 = arith.constant 0 : i32
    return %c0_i32, %c0_i32_0 : i32, i32
  }
  func.func @transform_4(%arg0: i32) -> (i32, i32) {
    %c0_i32 = arith.constant 0 : i32
    %c0_i32_0 = arith.constant 0 : i32
    %c0_i32_1 = arith.constant 0 : i32
    return %c0_i32, %c0_i32_0 : i32, i32
  }
  func.func @transform_5(%arg0: i32) -> (i32, i32) {
    %c0_i32 = arith.constant 0 : i32
    %c0_i32_0 = arith.constant 0 : i32
    %c0_i32_1 = arith.constant 0 : i32
    return %c0_i32, %c0_i32_0 : i32, i32
  }
  func.func @transform_6(%arg0: i32) -> (i32, i32) {
    %c0_i32 = arith.constant 0 : i32
    %c0_i32_0 = arith.constant 0 : i32
    %c0_i32_1 = arith.constant 0 : i32
    return %c0_i32, %c0_i32_0 : i32, i32
  }
  func.func @transform_7(%arg0: i32) -> (i32, i32) {
    %c0_i32 = arith.constant 0 : i32
    %c0_i32_0 = arith.constant 0 : i32
    %c0_i32_1 = arith.constant 0 : i32
    return %c0_i32, %c0_i32_0 : i32, i32
  }
  func.func @transform_8(%arg0: i32) -> (i32, i32) {
    %c0_i32 = arith.constant 0 : i32
    %c0_i32_0 = arith.constant 0 : i32
    %c0_i32_1 = arith.constant 0 : i32
    return %c0_i32, %c0_i32_0 : i32, i32
  }
  func.func @transform_9(%arg0: i32) -> (i32, i32) {
    %c0_i32 = arith.constant 0 : i32
    %c0_i32_0 = arith.constant 0 : i32
    %c0_i32_1 = arith.constant 0 : i32
    return %c0_i32, %c0_i32_0 : i32, i32
  }
  func.func @transform_10(%arg0: i32) -> (i32, i32) {
    %c0_i32 = arith.constant 0 : i32
    %c0_i32_0 = arith.constant 0 : i32
    %c0_i32_1 = arith.constant 0 : i32
    return %c0_i32, %c0_i32_0 : i32, i32
  }
  func.func @transform_11(%arg0: i32) -> (i32, i32) {
    %c0_i32 = arith.constant 0 : i32
    %c0_i32_0 = arith.constant 0 : i32
    return %arg0, %c0_i32 : i32, i32
  }
}

</mosaic_0001>

<llo_original>
// kernel: tpu_custom_call.1
$region0: #{tpu_custom_call.1}
  #allocation0 [shape = 'u32[]', space=smem, size = 0x4, offset = 0x4, fixed_abs, tag = 'smem constant byte address 0x4 - core index']
  #allocation1 [shape = 'u32[144,128]{1,0:T(1,128)}', space=vmem, size = 0x12000, scoped, tag = 'internal scratch']
  %s0 = inlined_call_operand.vmem [shape: f32[128,132], index: 0, kind: input, shape index: {}]
  %s1 = inlined_call_operand.vmem [shape: f32[132,128], index: 1, kind: input, shape index: {}]
  %s2 = inlined_call_operand.vmem [shape: f32[1,128], index: 2, kind: input, shape index: {}]
  %s3 = inlined_call_operand.vmem [shape: f32[128,128], index: 3, kind: input, shape index: {}]
  %s4 = inlined_call_operand.vmem [shape: f32[1,128], index: 4, kind: input, shape index: {}]
  %s5 = inlined_call_operand.vmem [shape: f32[128,128], index: 5, kind: input, shape index: {}]
  %s6 = inlined_call_operand.vmem [shape: f32[1,128], index: 6, kind: input, shape index: {}]
  %s7 = inlined_call_operand.hbm [shape: f32[128,128], index: 7, kind: input, shape index: {}]
  %s8 = inlined_call_operand.vmem [shape: f32[1,128], index: 8, kind: input, shape index: {}]
  %s9 = inlined_call_operand.vmem [shape: f32[128,32], index: 9, kind: input, shape index: {}]
  %s10 = inlined_call_operand.vmem [shape: f32[1,32], index: 10, kind: input, shape index: {}]
  %s11 = inlined_call_operand.vmem [shape: f32[128,32], index: 11, kind: output, shape index: {}]
  %s12 = sld [smem:[#allocation0]]
  $region58: #{tpu_custom_call.1} parent=0
    _
  %s14 = ssub.s32 1, %s12
  %s15 = scalar_select 0, %s14, %s12
  $region1: #{tpu_custom_call.1} parent=0
    #allocation2 [shape = 'u8[65536]{0}', space=vmem, size = 0x10000, scoped, tag = 'input window, operand 7, single buffered']
    #allocation3 [shape = 's32[1]{0}', space=sflag, size = 0x4, scoped, tag = 'scoped memory for tpu_custom_call.1']
    %16 = vsyncpa [#allocation3], 0
    // Predicated region
    $region2: #{tpu_custom_call.1} parent=1 // pred_check
      _
    $region3: #{tpu_custom_call.1} parent=1 // pred_check_branch
      %18 = sbr.rel (0) target = $region5
    $region4: #{tpu_custom_call.1} parent=1 // pred_region
      _
    $region5: #{tpu_custom_call.1} parent=1 // pred_fallthru
      _
    // Predicated region
    $region6: #{tpu_custom_call.1} parent=1 // pred_check
      _
    $region7: #{tpu_custom_call.1} parent=1 // pred_check_branch
      %20 = sbr.rel (0) target = $region9
    $region8: #{tpu_custom_call.1} parent=1 // pred_region
      _
    $region9: #{tpu_custom_call.1} parent=1 // pred_fallthru
      _
    // Predicated region
    $region10: #{tpu_custom_call.1} parent=1 // pred_check
      _
    $region11: #{tpu_custom_call.1} parent=1 // pred_check_branch
      %22 = sbr.rel (0) target = $region13
    $region12: #{tpu_custom_call.1} parent=1 // pred_region
      _
    $region13: #{tpu_custom_call.1} parent=1 // pred_fallthru
      _
    // Predicated region
    $region14: #{tpu_custom_call.1} parent=1 // pred_check
      _
    $region15: #{tpu_custom_call.1} parent=1 // pred_check_branch
      %24 = sbr.rel (0) target = $region17
    $region16: #{tpu_custom_call.1} parent=1 // pred_region
      _
    $region17: #{tpu_custom_call.1} parent=1 // pred_fallthru
      _
    // Predicated region
    $region18: #{tpu_custom_call.1} parent=1 // pred_check
      _
    $region19: #{tpu_custom_call.1} parent=1 // pred_check_branch
      %26 = sbr.rel (0) target = $region21
    $region20: #{tpu_custom_call.1} parent=1 // pred_region
      _
    $region21: #{tpu_custom_call.1} parent=1 // pred_fallthru
      _
    // Predicated region
    $region22: #{tpu_custom_call.1} parent=1 // pred_check
      _
    $region23: #{tpu_custom_call.1} parent=1 // pred_check_branch
      %28 = sbr.rel (0) target = $region25
    $region24: #{tpu_custom_call.1} parent=1 // pred_region
      _
    $region25: #{tpu_custom_call.1} parent=1 // pred_fallthru
      _
    // Predicated region
    $region26: #{tpu_custom_call.1} parent=1 // pred_check
      _
    $region27: #{tpu_custom_call.1} parent=1 // pred_check_branch
      %30 = sbr.rel (0) target = $region29
    $region28: #{tpu_custom_call.1} parent=1 // pred_region
      _
    $region29: #{tpu_custom_call.1} parent=1 // pred_fallthru
      _
    // Predicated region
    $region30: #{tpu_custom_call.1} parent=1 // pred_check
      _
    $region31: #{tpu_custom_call.1} parent=1 // pred_check_branch
      %32 = sbr.rel (0) target = $region33
    $region32: #{tpu_custom_call.1} parent=1 // pred_region
      %s34 = ssub.s32 2048, 2048
      %35 = vsyncadd [#allocation3], %s34
      %s36 = sshll.u32 [#allocation2], 4
      %s37 = int_to_ptr.vmem [resolvable:$true] %s36
      %42 = dma.hbm_to_vmem [thread:$0]  %s7, 2048, %s37, [#allocation3], 128, 128, 8
    $region33: #{tpu_custom_call.1} parent=1 // pred_fallthru
      _
    // Predicated region
    $region34: #{tpu_custom_call.1} parent=1 // pred_check
      _
    $region35: #{tpu_custom_call.1} parent=1 // pred_check_branch
      %44 = sbr.rel (0) target = $region37
    $region36: #{tpu_custom_call.1} parent=1 // pred_region
      _
    $region37: #{tpu_custom_call.1} parent=1 // pred_fallthru
      _
    // Predicated region
    $region38: #{tpu_custom_call.1} parent=1 // pred_check
      _
    $region39: #{tpu_custom_call.1} parent=1 // pred_check_branch
      %46 = sbr.rel (0) target = $region41
    $region40: #{tpu_custom_call.1} parent=1 // pred_region
      _
    $region41: #{tpu_custom_call.1} parent=1 // pred_fallthru
      _
    // Predicated region
    $region42: #{tpu_custom_call.1} parent=1 // pred_check
      _
    $region43: #{tpu_custom_call.1} parent=1 // pred_check_branch
      %48 = sbr.rel (0) target = $region45
    $region44: #{tpu_custom_call.1} parent=1 // pred_region
      _
    $region45: #{tpu_custom_call.1} parent=1 // pred_fallthru
      _
    // Predicated region
    $region46: #{tpu_custom_call.1} parent=1 // pred_check
      _
    $region47: #{tpu_custom_call.1} parent=1 // pred_check_branch
      %50 = sbr.rel (0) target = $region49
    $region48: #{tpu_custom_call.1} parent=1 // pred_region
      %51 = dma.done [#allocation3], 2048
    $region49: #{tpu_custom_call.1} parent=1 // pred_fallthru
      _
    %s52 = smul.u32 0, 2
    %s53 = smul.addr %s52, 8
    %s54 = scalar_lea.vmem %s0, %s53
    %v55 = vld [vmem:[%s54] sm:$0xff]
    %v56 = vld [vmem:[%s54 + $0x8] sm:$0xff]
    %v57 = vld [vmem:[%s54 + $0x10] sm:$0xff]
    %v58 = vld [vmem:[%s54 + $0x18] sm:$0xff]
    %v59 = vld [vmem:[%s54 + $0x20] sm:$0xff]
    %v60 = vld [vmem:[%s54 + $0x28] sm:$0xff]
    %v61 = vld [vmem:[%s54 + $0x30] sm:$0xff]
    %v62 = vld [vmem:[%s54 + $0x38] sm:$0xff]
    %v63 = vld [vmem:[%s54 + $0x40] sm:$0xff]
    %v64 = vld [vmem:[%s54 + $0x48] sm:$0xff]
    %v65 = vld [vmem:[%s54 + $0x50] sm:$0xff]
    %v66 = vld [vmem:[%s54 + $0x58] sm:$0xff]
    %v67 = vld [vmem:[%s54 + $0x60] sm:$0xff]
    %v68 = vld [vmem:[%s54 + $0x68] sm:$0xff]
    %v69 = vld [vmem:[%s54 + $0x70] sm:$0xff]
    %v70 = vld [vmem:[%s54 + $0x78] sm:$0xff]
    %v71 = vld [vmem:[%s54 + $0x80] sm:$0xff]
    %v72 = vld [vmem:[%s54 + $0x88] sm:$0xff]
    %v73 = vld [vmem:[%s54 + $0x90] sm:$0xff]
    %v74 = vld [vmem:[%s54 + $0x98] sm:$0xff]
    %v75 = vld [vmem:[%s54 + $0xa0] sm:$0xff]
    %v76 = vld [vmem:[%s54 + $0xa8] sm:$0xff]
    %v77 = vld [vmem:[%s54 + $0xb0] sm:$0xff]
    %v78 = vld [vmem:[%s54 + $0xb8] sm:$0xff]
    %v79 = vld [vmem:[%s54 + $0xc0] sm:$0xff]
    %v80 = vld [vmem:[%s54 + $0xc8] sm:$0xff]
    %v81 = vld [vmem:[%s54 + $0xd0] sm:$0xff]
    %v82 = vld [vmem:[%s54 + $0xd8] sm:$0xff]
    %v83 = vld [vmem:[%s54 + $0xe0] sm:$0xff]
    %v84 = vld [vmem:[%s54 + $0xe8] sm:$0xff]
    %v85 = vld [vmem:[%s54 + $0xf0] sm:$0xff]
    %v86 = vld [vmem:[%s54 + $0xf8] sm:$0xff]
    %v87 = vld [vmem:[%s1] sm:$0xff]
    %v88 = vld [vmem:[%s1 + $0x8] sm:$0xff]
    %v89 = vld [vmem:[%s1 + $0x10] sm:$0xff]
    %v90 = vld [vmem:[%s1 + $0x18] sm:$0xff]
    %v91 = vld [vmem:[%s1 + $0x20] sm:$0xff]
    %v92 = vld [vmem:[%s1 + $0x28] sm:$0xff]
    %v93 = vld [vmem:[%s1 + $0x30] sm:$0xff]
    %v94 = vld [vmem:[%s1 + $0x38] sm:$0xff]
    %v95 = vld [vmem:[%s1 + $0x40] sm:$0xff]
    %v96 = vld [vmem:[%s1 + $0x48] sm:$0xff]
    %v97 = vld [vmem:[%s1 + $0x50] sm:$0xff]
    %v98 = vld [vmem:[%s1 + $0x58] sm:$0xff]
    %v99 = vld [vmem:[%s1 + $0x60] sm:$0xff]
    %v100 = vld [vmem:[%s1 + $0x68] sm:$0xff]
    %v101 = vld [vmem:[%s1 + $0x70] sm:$0xff]
    %v102 = vld [vmem:[%s1 + $0x78] sm:$0xff]
    %v103 = vld [vmem:[%s1 + $0x80] sm:$0xf]
    %v104 = vld [vmem:[%s2] sm:$0x1]
    %v106 = vlaneseq
    %v107 = vshrl.u32 %v106, 7
    %v108 = vsub.s32 0, %v107
    %v109 = vrot.slane %v104, %v108
    %vm111 = vcmask 31744
    %v113 = vsel %vm111, %v56, 0
    %v116 = vsel %vm111, %v58, 0
    %v119 = vsel %vm111, %v60, 0
    %v122 = vsel %vm111, %v62, 0
    %v125 = vsel %vm111, %v64, 0
    %v128 = vsel %vm111, %v66, 0
    %v131 = vsel %vm111, %v68, 0
    %v134 = vsel %vm111, %v70, 0
    %v137 = vsel %vm111, %v72, 0
    %v140 = vsel %vm111, %v74, 0
    %v143 = vsel %vm111, %v76, 0
    %v146 = vsel %vm111, %v78, 0
    %v149 = vsel %vm111, %v80, 0
    %v152 = vsel %vm111, %v82, 0
    %v155 = vsel %vm111, %v84, 0
    %v158 = vsel %vm111, %v86, 0
    %vm160 = vcmask 1043456
    %v162 = vsel %vm160, %v103, 0
    %164 = vmatprep.subr.mxu0 0.0
    %165 = vmatpush1.msra.mxu0 %v87
    %166 = vmatprep.subr.mxu0 0.0
    %167 = vmatpush1.msra.mxu0 %v88
    %168 = vmatprep.subr.mxu0 0.0
    %169 = vmatpush1.msra.mxu0 %v89
    %170 = vmatprep.subr.mxu0 0.0
    %171 = vmatpush1.msra.mxu0 %v90
    %172 = vmatprep.subr.mxu0 0.0
    %173 = vmatpush1.msra.mxu0 %v91
    %174 = vmatprep.subr.mxu0 0.0
    %175 = vmatpush1.msra.mxu0 %v92
    %176 = vmatprep.subr.mxu0 0.0
    %177 = vmatpush1.msra.mxu0 %v93
    %178 = vmatprep.subr.mxu0 0.0
    %179 = vmatpush1.msra.mxu0 %v94
    %180 = vmatprep.subr.mxu0 0.0
    %181 = vmatpush1.msra.mxu0 %v95
    %182 = vmatprep.subr.mxu0 0.0
    %183 = vmatpush1.msra.mxu0 %v96
    %184 = vmatprep.subr.mxu0 0.0
    %185 = vmatpush1.msra.mxu0 %v97
    %186 = vmatprep.subr.mxu0 0.0
    %187 = vmatpush1.msra.mxu0 %v98
    %188 = vmatprep.subr.mxu0 0.0
    %189 = vmatpush1.msra.mxu0 %v99
    %190 = vmatprep.subr.mxu0 0.0
    %191 = vmatpush1.msra.mxu0 %v100
    %192 = vmatprep.subr.mxu0 0.0
    %193 = vmatpush1.msra.mxu0 %v101
    %194 = vmatprep.subr.mxu0 0.0
    %195 = vmatpush1.msra.mxu0 %v102
    %196 = vmatprep.subr.mxu0 0.0
    %197 = vmatpush1.msra.mxu0 %v162
    %198 = vmatprep.subr.mxu0 0.0
    %199 = vmatpush1.msra.mxu0 0.0
    %200 = vmatprep.subr.mxu0 0.0
    %201 = vmatpush1.msra.mxu0 0.0
    %202 = vmatprep.subr.mxu0 0.0
    %203 = vmatpush1.msra.mxu0 0.0
    %204 = vmatprep.subr.mxu0 0.0
    %205 = vmatpush1.msra.mxu0 0.0
    %206 = vmatprep.subr.mxu0 0.0
    %207 = vmatpush1.msra.mxu0 0.0
    %208 = vmatprep.subr.mxu0 0.0
    %209 = vmatpush1.msra.mxu0 0.0
    %210 = vmatprep.subr.mxu0 0.0
    %211 = vmatpush1.msra.mxu0 0.0
    %212 = vmatprep.subr.mxu0 0.0
    %213 = vmatpush1.msra.mxu0 0.0
    %214 = vmatprep.subr.mxu0 0.0
    %215 = vmatpush1.msra.mxu0 0.0
    %216 = vmatprep.subr.mxu0 0.0
    %217 = vmatpush1.msra.mxu0 0.0
    %218 = vmatprep.subr.mxu0 0.0
    %219 = vmatpush1.msra.mxu0 0.0
    %220 = vmatprep.subr.mxu0 0.0
    %221 = vmatpush1.msra.mxu0 0.0
    %222 = vmatprep.subr.mxu0 0.0
    %223 = vmatpush1.msra.mxu0 0.0
    %224 = vmatprep.subr.mxu0 0.0
    %225 = vmatpush1.msra.mxu0 0.0
    %226 = vmatprep.subr.mxu0 0.0
    %227 = vmatpush1.msra.mxu0 0.0
    %228 = vmatprep.mubr.f32.mxu0 %v113
    %229 = vmatmul.mubr.f32.gmra.mrb[0].mxu0 %v55
    %v230 = vpop.f32.mrb[0].mxu0
    %v231 = vadd.f32 %v109, %v230
    %v232 = vpop.f32.mrb[0].mxu0
    %233 = vmatprep.mubr.f32.mxu0 %v116
    %234 = vmatmul.mubr.f32.gmra.mrb[0].mxu0 %v57
    %v235 = vpop.f32.mrb[0].mxu0
    %v236 = vadd.f32 %v109, %v235
    %v237 = vpop.f32.mrb[0].mxu0
    %238 = vmatprep.mubr.f32.mxu0 %v119
    %239 = vmatmul.mubr.f32.gmra.mrb[0].mxu0 %v59
    %v240 = vpop.f32.mrb[0].mxu0
    %v241 = vadd.f32 %v109, %v240
    %v242 = vpop.f32.mrb[0].mxu0
    %243 = vmatprep.mubr.f32.mxu0 %v122
    %244 = vmatmul.mubr.f32.gmra.mrb[0].mxu0 %v61
    %v245 = vpop.f32.mrb[0].mxu0
    %v246 = vadd.f32 %v109, %v245
    %v247 = vpop.f32.mrb[0].mxu0
    %248 = vmatprep.mubr.f32.mxu0 %v125
    %249 = vmatmul.mubr.f32.gmra.mrb[0].mxu0 %v63
    %v250 = vpop.f32.mrb[0].mxu0
    %v251 = vadd.f32 %v109, %v250
    %v252 = vpop.f32.mrb[0].mxu0
    %253 = vmatprep.mubr.f32.mxu0 %v128
    %254 = vmatmul.mubr.f32.gmra.mrb[0].mxu0 %v65
    %v255 = vpop.f32.mrb[0].mxu0
    %v256 = vadd.f32 %v109, %v255
    %v257 = vpop.f32.mrb[0].mxu0
    %258 = vmatprep.mubr.f32.mxu0 %v131
    %259 = vmatmul.mubr.f32.gmra.mrb[0].mxu0 %v67
    %v260 = vpop.f32.mrb[0].mxu0
    %v261 = vadd.f32 %v109, %v260
    %v262 = vpop.f32.mrb[0].mxu0
    %263 = vmatprep.mubr.f32.mxu0 %v134
    %264 = vmatmul.mubr.f32.gmra.mrb[0].mxu0 %v69
    %v265 = vpop.f32.mrb[0].mxu0
    %v266 = vadd.f32 %v109, %v265
    %v267 = vpop.f32.mrb[0].mxu0
    %268 = vmatprep.mubr.f32.mxu0 %v137
    %269 = vmatmul.mubr.f32.gmra.mrb[0].mxu0 %v71
    %v270 = vpop.f32.mrb[0].mxu0
    %v271 = vadd.f32 %v109, %v270
    %v272 = vpop.f32.mrb[0].mxu0
    %273 = vmatprep.mubr.f32.mxu0 %v140
    %274 = vmatmul.mubr.f32.gmra.mrb[0].mxu0 %v73
    %v275 = vpop.f32.mrb[0].mxu0
    %v276 = vadd.f32 %v109, %v275
    %v277 = vpop.f32.mrb[0].mxu0
    %278 = vmatprep.mubr.f32.mxu0 %v143
    %279 = vmatmul.mubr.f32.gmra.mrb[0].mxu0 %v75
    %v280 = vpop.f32.mrb[0].mxu0
    %v281 = vadd.f32 %v109, %v280
    %v282 = vpop.f32.mrb[0].mxu0
    %283 = vmatprep.mubr.f32.mxu0 %v146
    %284 = vmatmul.mubr.f32.gmra.mrb[0].mxu0 %v77
    %v285 = vpop.f32.mrb[0].mxu0
    %v286 = vadd.f32 %v109, %v285
    %v287 = vpop.f32.mrb[0].mxu0
    %288 = vmatprep.mubr.f32.mxu0 %v149
    %289 = vmatmul.mubr.f32.gmra.mrb[0].mxu0 %v79
    %v290 = vpop.f32.mrb[0].mxu0
    %v291 = vadd.f32 %v109, %v290
    %v292 = vpop.f32.mrb[0].mxu0
    %293 = vmatprep.mubr.f32.mxu0 %v152
    %294 = vmatmul.mubr.f32.gmra.mrb[0].mxu0 %v81
    %v295 = vpop.f32.mrb[0].mxu0
    %v296 = vadd.f32 %v109, %v295
    %v297 = vpop.f32.mrb[0].mxu0
    %298 = vmatprep.mubr.f32.mxu0 %v155
    %299 = vmatmul.mubr.f32.gmra.mrb[0].mxu0 %v83
    %v300 = vpop.f32.mrb[0].mxu0
    %v301 = vadd.f32 %v109, %v300
    %v302 = vpop.f32.mrb[0].mxu0
    %303 = vmatprep.mubr.f32.mxu0 %v158
    %304 = vmatmul.mubr.f32.gmra.mrb[0].mxu0 %v85
    %v305 = vpop.f32.mrb[0].mxu0
    %v306 = vadd.f32 %v109, %v305
    %v307 = vpop.f32.mrb[0].mxu0
    %308 = vdwg.mxu0
    %vm309 = vcmp.gt.f32.partialorder %v231, 0.0
    %vm310 = vcmp.gt.f32.partialorder %v236, 0.0
    %vm311 = vcmp.gt.f32.partialorder %v241, 0.0
    %vm312 = vcmp.gt.f32.partialorder %v246, 0.0
    %vm313 = vcmp.gt.f32.partialorder %v251, 0.0
    %vm314 = vcmp.gt.f32.partialorder %v256, 0.0
    %vm315 = vcmp.gt.f32.partialorder %v261, 0.0
    %vm316 = vcmp.gt.f32.partialorder %v266, 0.0
    %vm317 = vcmp.gt.f32.partialorder %v271, 0.0
    %vm318 = vcmp.gt.f32.partialorder %v276, 0.0
    %vm319 = vcmp.gt.f32.partialorder %v281, 0.0
    %vm320 = vcmp.gt.f32.partialorder %v286, 0.0
    %vm321 = vcmp.gt.f32.partialorder %v291, 0.0
    %vm322 = vcmp.gt.f32.partialorder %v296, 0.0
    %vm323 = vcmp.gt.f32.partialorder %v301, 0.0
    %vm324 = vcmp.gt.f32.partialorder %v306, 0.0
    %v325 = vmul.f32 %v231, 0.01
    %v326 = vmul.f32 %v236, 0.01
    %v327 = vmul.f32 %v241, 0.01
    %v328 = vmul.f32 %v246, 0.01
    %v329 = vmul.f32 %v251, 0.01
    %v330 = vmul.f32 %v256, 0.01
    %v331 = vmul.f32 %v261, 0.01
    %v332 = vmul.f32 %v266, 0.01
    %v333 = vmul.f32 %v271, 0.01
    %v334 = vmul.f32 %v276, 0.01
    %v335 = vmul.f32 %v281, 0.01
    %v336 = vmul.f32 %v286, 0.01
    %v337 = vmul.f32 %v291, 0.01
    %v338 = vmul.f32 %v296, 0.01
    %v339 = vmul.f32 %v301, 0.01
    %v340 = vmul.f32 %v306, 0.01
    %v341 = vsel %vm309, %v231, %v325
    %v342 = vsel %vm310, %v236, %v326
    %v343 = vsel %vm311, %v241, %v327
    %v344 = vsel %vm312, %v246, %v328
    %v345 = vsel %vm313, %v251, %v329
    %v346 = vsel %vm314, %v256, %v330
    %v347 = vsel %vm315, %v261, %v331
    %v348 = vsel %vm316, %v266, %v332
    %v349 = vsel %vm317, %v271, %v333
    %v350 = vsel %vm318, %v276, %v334
    %v351 = vsel %vm319, %v281, %v335
    %v352 = vsel %vm320, %v286, %v336
    %v353 = vsel %vm321, %v291, %v337
    %v354 = vsel %vm322, %v296, %v338
    %v355 = vsel %vm323, %v301, %v339
    %v356 = vsel %vm324, %v306, %v340
    %v357 = vld [vmem:[%s3] sm:$0xff]
    %v358 = vld [vmem:[%s3 + $0x8] sm:$0xff]
    %v359 = vld [vmem:[%s3 + $0x10] sm:$0xff]
    %v360 = vld [vmem:[%s3 + $0x18] sm:$0xff]
    %v361 = vld [vmem:[%s3 + $0x20] sm:$0xff]
    %v362 = vld [vmem:[%s3 + $0x28] sm:$0xff]
    %v363 = vld [vmem:[%s3 + $0x30] sm:$0xff]
    %v364 = vld [vmem:[%s3 + $0x38] sm:$0xff]
    %v365 = vld [vmem:[%s3 + $0x40] sm:$0xff]
    %v366 = vld [vmem:[%s3 + $0x48] sm:$0xff]
    %v367 = vld [vmem:[%s3 + $0x50] sm:$0xff]
    %v368 = vld [vmem:[%s3 + $0x58] sm:$0xff]
    %v369 = vld [vmem:[%s3 + $0x60] sm:$0xff]
    %v370 = vld [vmem:[%s3 + $0x68] sm:$0xff]
    %v371 = vld [vmem:[%s3 + $0x70] sm:$0xff]
    %v372 = vld [vmem:[%s3 + $0x78] sm:$0xff]
    %v373 = vld [vmem:[%s4] sm:$0x1]
    %v375 = vlaneseq
    %v376 = vshrl.u32 %v375, 7
    %v377 = vsub.s32 0, %v376
    %v378 = vrot.slane %v373, %v377
    %380 = vmatprep.subr.mxu0 0.0
    %381 = vmatpush1.msra.mxu0 %v357
    %382 = vmatprep.subr.mxu0 0.0
    %383 = vmatpush1.msra.mxu0 %v358
    %384 = vmatprep.subr.mxu0 0.0
    %385 = vmatpush1.msra.mxu0 %v359
    %386 = vmatprep.subr.mxu0 0.0
    %387 = vmatpush1.msra.mxu0 %v360
    %388 = vmatprep.subr.mxu0 0.0
    %389 = vmatpush1.msra.mxu0 %v361
    %390 = vmatprep.subr.mxu0 0.0
    %391 = vmatpush1.msra.mxu0 %v362
    %392 = vmatprep.subr.mxu0 0.0
    %393 = vmatpush1.msra.mxu0 %v363
    %394 = vmatprep.subr.mxu0 0.0
    %395 = vmatpush1.msra.mxu0 %v364
    %396 = vmatprep.subr.mxu0 0.0
    %397 = vmatpush1.msra.mxu0 %v365
    %398 = vmatprep.subr.mxu0 0.0
    %399 = vmatpush1.msra.mxu0 %v366
    %400 = vmatprep.subr.mxu0 0.0
    %401 = vmatpush1.msra.mxu0 %v367
    %402 = vmatprep.subr.mxu0 0.0
    %403 = vmatpush1.msra.mxu0 %v368
    %404 = vmatprep.subr.mxu0 0.0
    %405 = vmatpush1.msra.mxu0 %v369
    %406 = vmatprep.subr.mxu0 0.0
    %407 = vmatpush1.msra.mxu0 %v370
    %408 = vmatprep.subr.mxu0 0.0
    %409 = vmatpush1.msra.mxu0 %v371
    %410 = vmatprep.subr.mxu0 0.0
    %411 = vmatpush1.msra.mxu0 %v372
    %412 = vmatprep.subr.mxu0 0.0
    %413 = vmatpush1.msra.mxu0 0.0
    %414 = vmatprep.subr.mxu0 0.0
    %415 = vmatpush1.msra.mxu0 0.0
    %416 = vmatprep.subr.mxu0 0.0
    %417 = vmatpush1.msra.mxu0 0.0
    %418 = vmatprep.subr.mxu0 0.0
    %419 = vmatpush1.msra.mxu0 0.0
    %420 = vmatprep.subr.mxu0 0.0
    %421 = vmatpush1.msra.mxu0 0.0
    %422 = vmatprep.subr.mxu0 0.0
    %423 = vmatpush1.msra.mxu0 0.0
    %424 = vmatprep.subr.mxu0 0.0
    %425 = vmatpush1.msra.mxu0 0.0
    %426 = vmatprep.subr.mxu0 0.0
    %427 = vmatpush1.msra.mxu0 0.0
    %428 = vmatprep.subr.mxu0 0.0
    %429 = vmatpush1.msra.mxu0 0.0
    %430 = vmatprep.subr.mxu0 0.0
    %431 = vmatpush1.msra.mxu0 0.0
    %432 = vmatprep.subr.mxu0 0.0
    %433 = vmatpush1.msra.mxu0 0.0
    %434 = vmatprep.subr.mxu0 0.0
    %435 = vmatpush1.msra.mxu0 0.0
    %436 = vmatprep.subr.mxu0 0.0
    %437 = vmatpush1.msra.mxu0 0.0
    %438 = vmatprep.subr.mxu0 0.0
    %439 = vmatpush1.msra.mxu0 0.0
    %440 = vmatprep.subr.mxu0 0.0
    %441 = vmatpush1.msra.mxu0 0.0
    %442 = vmatprep.subr.mxu0 0.0
    %443 = vmatpush1.msra.mxu0 0.0
    %444 = vmatprep.mubr.f32.mxu0 0.0
    %445 = vmatmul.mubr.f32.gmra.mrb[0].mxu0 %v341
    %v446 = vpop.f32.mrb[0].mxu0
    %v447 = vadd.f32 %v378, %v446
    %v448 = vpop.f32.mrb[0].mxu0
    %449 = vmatprep.mubr.f32.mxu0 0.0
    %450 = vmatmul.mubr.f32.gmra.mrb[0].mxu0 %v342
    %v451 = vpop.f32.mrb[0].mxu0
    %v452 = vadd.f32 %v378, %v451
    %v453 = vpop.f32.mrb[0].mxu0
    %454 = vmatprep.mubr.f32.mxu0 0.0
    %455 = vmatmul.mubr.f32.gmra.mrb[0].mxu0 %v343
    %v456 = vpop.f32.mrb[0].mxu0
    %v457 = vadd.f32 %v378, %v456
    %v458 = vpop.f32.mrb[0].mxu0
    %459 = vmatprep.mubr.f32.mxu0 0.0
    %460 = vmatmul.mubr.f32.gmra.mrb[0].mxu0 %v344
    %v461 = vpop.f32.mrb[0].mxu0
    %v462 = vadd.f32 %v378, %v461
    %v463 = vpop.f32.mrb[0].mxu0
    %464 = vmatprep.mubr.f32.mxu0 0.0
    %465 = vmatmul.mubr.f32.gmra.mrb[0].mxu0 %v345
    %v466 = vpop.f32.mrb[0].mxu0
    %v467 = vadd.f32 %v378, %v466
    %v468 = vpop.f32.mrb[0].mxu0
    %469 = vmatprep.mubr.f32.mxu0 0.0
    %470 = vmatmul.mubr.f32.gmra.mrb[0].mxu0 %v346
    %v471 = vpop.f32.mrb[0].mxu0
    %v472 = vadd.f32 %v378, %v471
    %v473 = vpop.f32.mrb[0].mxu0
    %474 = vmatprep.mubr.f32.mxu0 0.0
    %475 = vmatmul.mubr.f32.gmra.mrb[0].mxu0 %v347
    %v476 = vpop.f32.mrb[0].mxu0
    %v477 = vadd.f32 %v378, %v476
    %v478 = vpop.f32.mrb[0].mxu0
    %479 = vmatprep.mubr.f32.mxu0 0.0
    %480 = vmatmul.mubr.f32.gmra.mrb[0].mxu0 %v348
    %v481 = vpop.f32.mrb[0].mxu0
    %v482 = vadd.f32 %v378, %v481
    %v483 = vpop.f32.mrb[0].mxu0
    %484 = vmatprep.mubr.f32.mxu0 0.0
    %485 = vmatmul.mubr.f32.gmra.mrb[0].mxu0 %v349
    %v486 = vpop.f32.mrb[0].mxu0
    %v487 = vadd.f32 %v378, %v486
    %v488 = vpop.f32.mrb[0].mxu0
    %489 = vmatprep.mubr.f32.mxu0 0.0
    %490 = vmatmul.mubr.f32.gmra.mrb[0].mxu0 %v350
    %v491 = vpop.f32.mrb[0].mxu0
    %v492 = vadd.f32 %v378, %v491
    %v493 = vpop.f32.mrb[0].mxu0
    %494 = vmatprep.mubr.f32.mxu0 0.0
    %495 = vmatmul.mubr.f32.gmra.mrb[0].mxu0 %v351
    %v496 = vpop.f32.mrb[0].mxu0
    %v497 = vadd.f32 %v378, %v496
    %v498 = vpop.f32.mrb[0].mxu0
    %499 = vmatprep.mubr.f32.mxu0 0.0
    %500 = vmatmul.mubr.f32.gmra.mrb[0].mxu0 %v352
    %v501 = vpop.f32.mrb[0].mxu0
    %v502 = vadd.f32 %v378, %v501
    %v503 = vpop.f32.mrb[0].mxu0
    %504 = vmatprep.mubr.f32.mxu0 0.0
    %505 = vmatmul.mubr.f32.gmra.mrb[0].mxu0 %v353
    %v506 = vpop.f32.mrb[0].mxu0
    %v507 = vadd.f32 %v378, %v506
    %v508 = vpop.f32.mrb[0].mxu0
    %509 = vmatprep.mubr.f32.mxu0 0.0
    %510 = vmatmul.mubr.f32.gmra.mrb[0].mxu0 %v354
    %v511 = vpop.f32.mrb[0].mxu0
    %v512 = vadd.f32 %v378, %v511
    %v513 = vpop.f32.mrb[0].mxu0
    %514 = vmatprep.mubr.f32.mxu0 0.0
    %515 = vmatmul.mubr.f32.gmra.mrb[0].mxu0 %v355
    %v516 = vpop.f32.mrb[0].mxu0
    %v517 = vadd.f32 %v378, %v516
    %v518 = vpop.f32.mrb[0].mxu0
    %519 = vmatprep.mubr.f32.mxu0 0.0
    %520 = vmatmul.mubr.f32.gmra.mrb[0].mxu0 %v356
    %v521 = vpop.f32.mrb[0].mxu0
    %v522 = vadd.f32 %v378, %v521
    %v523 = vpop.f32.mrb[0].mxu0
    %524 = vdwg.mxu0
    %vm525 = vcmp.gt.f32.partialorder %v447, 0.0
    %vm526 = vcmp.gt.f32.partialorder %v452, 0.0
    %vm527 = vcmp.gt.f32.partialorder %v457, 0.0
    %vm528 = vcmp.gt.f32.partialorder %v462, 0.0
    %vm529 = vcmp.gt.f32.partialorder %v467, 0.0
    %vm530 = vcmp.gt.f32.partialorder %v472, 0.0
    %vm531 = vcmp.gt.f32.partialorder %v477, 0.0
    %vm532 = vcmp.gt.f32.partialorder %v482, 0.0
    %vm533 = vcmp.gt.f32.partialorder %v487, 0.0
    %vm534 = vcmp.gt.f32.partialorder %v492, 0.0
    %vm535 = vcmp.gt.f32.partialorder %v497, 0.0
    %vm536 = vcmp.gt.f32.partialorder %v502, 0.0
    %vm537 = vcmp.gt.f32.partialorder %v507, 0.0
    %vm538 = vcmp.gt.f32.partialorder %v512, 0.0
    %vm539 = vcmp.gt.f32.partialorder %v517, 0.0
    %vm540 = vcmp.gt.f32.partialorder %v522, 0.0
    %v541 = vmul.f32 %v447, 0.01
    %v542 = vmul.f32 %v452, 0.01
    %v543 = vmul.f32 %v457, 0.01
    %v544 = vmul.f32 %v462, 0.01
    %v545 = vmul.f32 %v467, 0.01
    %v546 = vmul.f32 %v472, 0.01
    %v547 = vmul.f32 %v477, 0.01
    %v548 = vmul.f32 %v482, 0.01
    %v549 = vmul.f32 %v487, 0.01
    %v550 = vmul.f32 %v492, 0.01
    %v551 = vmul.f32 %v497, 0.01
    %v552 = vmul.f32 %v502, 0.01
    %v553 = vmul.f32 %v507, 0.01
    %v554 = vmul.f32 %v512, 0.01
    %v555 = vmul.f32 %v517, 0.01
    %v556 = vmul.f32 %v522, 0.01
    %v557 = vsel %vm525, %v447, %v541
    %v558 = vsel %vm526, %v452, %v542
    %v559 = vsel %vm527, %v457, %v543
    %v560 = vsel %vm528, %v462, %v544
    %v561 = vsel %vm529, %v467, %v545
    %v562 = vsel %vm530, %v472, %v546
    %v563 = vsel %vm531, %v477, %v547
    %v564 = vsel %vm532, %v482, %v548
    %v565 = vsel %vm533, %v487, %v549
    %v566 = vsel %vm534, %v492, %v550
    %v567 = vsel %vm535, %v497, %v551
    %v568 = vsel %vm536, %v502, %v552
    %v569 = vsel %vm537, %v507, %v553
    %v570 = vsel %vm538, %v512, %v554
    %v571 = vsel %vm539, %v517, %v555
    %v572 = vsel %vm540, %v522, %v556
    %v573 = vld [vmem:[%s5] sm:$0xff]
    %v574 = vld [vmem:[%s5 + $0x8] sm:$0xff]
    %v575 = vld [vmem:[%s5 + $0x10] sm:$0xff]
    %v576 = vld [vmem:[%s5 + $0x18] sm:$0xff]
    %v577 = vld [vmem:[%s5 + $0x20] sm:$0xff]
    %v578 = vld [vmem:[%s5 + $0x28] sm:$0xff]
    %v579 = vld [vmem:[%s5 + $0x30] sm:$0xff]
    %v580 = vld [vmem:[%s5 + $0x38] sm:$0xff]
    %v581 = vld [vmem:[%s5 + $0x40] sm:$0xff]
    %v582 = vld [vmem:[%s5 + $0x48] sm:$0xff]
    %v583 = vld [vmem:[%s5 + $0x50] sm:$0xff]
    %v584 = vld [vmem:[%s5 + $0x58] sm:$0xff]
    %v585 = vld [vmem:[%s5 + $0x60] sm:$0xff]
    %v586 = vld [vmem:[%s5 + $0x68] sm:$0xff]
    %v587 = vld [vmem:[%s5 + $0x70] sm:$0xff]
    %v588 = vld [vmem:[%s5 + $0x78] sm:$0xff]
    %v589 = vld [vmem:[%s6] sm:$0x1]
    %v591 = vlaneseq
    %v592 = vshrl.u32 %v591, 7
    %v593 = vsub.s32 0, %v592
    %v594 = vrot.slane %v589, %v593
    %596 = vmatprep.subr.mxu0 0.0
    %597 = vmatpush1.msra.mxu0 %v573
    %598 = vmatprep.subr.mxu0 0.0
    %599 = vmatpush1.msra.mxu0 %v574
    %600 = vmatprep.subr.mxu0 0.0
    %601 = vmatpush1.msra.mxu0 %v575
    %602 = vmatprep.subr.mxu0 0.0
    %603 = vmatpush1.msra.mxu0 %v576
    %604 = vmatprep.subr.mxu0 0.0
    %605 = vmatpush1.msra.mxu0 %v577
    %606 = vmatprep.subr.mxu0 0.0
    %607 = vmatpush1.msra.mxu0 %v578
    %608 = vmatprep.subr.mxu0 0.0
    %609 = vmatpush1.msra.mxu0 %v579
    %610 = vmatprep.subr.mxu0 0.0
    %611 = vmatpush1.msra.mxu0 %v580
    %612 = vmatprep.subr.mxu0 0.0
    %613 = vmatpush1.msra.mxu0 %v581
    %614 = vmatprep.subr.mxu0 0.0
    %615 = vmatpush1.msra.mxu0 %v582
    %616 = vmatprep.subr.mxu0 0.0
    %617 = vmatpush1.msra.mxu0 %v583
    %618 = vmatprep.subr.mxu0 0.0
    %619 = vmatpush1.msra.mxu0 %v584
    %620 = vmatprep.subr.mxu0 0.0
    %621 = vmatpush1.msra.mxu0 %v585
    %622 = vmatprep.subr.mxu0 0.0
    %623 = vmatpush1.msra.mxu0 %v586
    %624 = vmatprep.subr.mxu0 0.0
    %625 = vmatpush1.msra.mxu0 %v587
    %626 = vmatprep.subr.mxu0 0.0
    %627 = vmatpush1.msra.mxu0 %v588
    %628 = vmatprep.subr.mxu0 0.0
    %629 = vmatpush1.msra.mxu0 0.0
    %630 = vmatprep.subr.mxu0 0.0
    %631 = vmatpush1.msra.mxu0 0.0
    %632 = vmatprep.subr.mxu0 0.0
    %633 = vmatpush1.msra.mxu0 0.0
    %634 = vmatprep.subr.mxu0 0.0
    %635 = vmatpush1.msra.mxu0 0.0
    %636 = vmatprep.subr.mxu0 0.0
    %637 = vmatpush1.msra.mxu0 0.0
    %638 = vmatprep.subr.mxu0 0.0
    %639 = vmatpush1.msra.mxu0 0.0
    %640 = vmatprep.subr.mxu0 0.0
    %641 = vmatpush1.msra.mxu0 0.0
    %642 = vmatprep.subr.mxu0 0.0
    %643 = vmatpush1.msra.mxu0 0.0
    %644 = vmatprep.subr.mxu0 0.0
    %645 = vmatpush1.msra.mxu0 0.0
    %646 = vmatprep.subr.mxu0 0.0
    %647 = vmatpush1.msra.mxu0 0.0
    %648 = vmatprep.subr.mxu0 0.0
    %649 = vmatpush1.msra.mxu0 0.0
    %650 = vmatprep.subr.mxu0 0.0
    %651 = vmatpush1.msra.mxu0 0.0
    %652 = vmatprep.subr.mxu0 0.0
    %653 = vmatpush1.msra.mxu0 0.0
    %654 = vmatprep.subr.mxu0 0.0
    %655 = vmatpush1.msra.mxu0 0.0
    %656 = vmatprep.subr.mxu0 0.0
    %657 = vmatpush1.msra.mxu0 0.0
    %658 = vmatprep.subr.mxu0 0.0
    %659 = vmatpush1.msra.mxu0 0.0
    %660 = vmatprep.mubr.f32.mxu0 0.0
    %661 = vmatmul.mubr.f32.gmra.mrb[0].mxu0 %v557
    %v662 = vpop.f32.mrb[0].mxu0
    %v663 = vadd.f32 %v594, %v662
    %v664 = vpop.f32.mrb[0].mxu0
    %665 = vmatprep.mubr.f32.mxu0 0.0
    %666 = vmatmul.mubr.f32.gmra.mrb[0].mxu0 %v558
    %v667 = vpop.f32.mrb[0].mxu0
    %v668 = vadd.f32 %v594, %v667
    %v669 = vpop.f32.mrb[0].mxu0
    %670 = vmatprep.mubr.f32.mxu0 0.0
    %671 = vmatmul.mubr.f32.gmra.mrb[0].mxu0 %v559
    %v672 = vpop.f32.mrb[0].mxu0
    %v673 = vadd.f32 %v594, %v672
    %v674 = vpop.f32.mrb[0].mxu0
    %675 = vmatprep.mubr.f32.mxu0 0.0
    %676 = vmatmul.mubr.f32.gmra.mrb[0].mxu0 %v560
    %v677 = vpop.f32.mrb[0].mxu0
    %v678 = vadd.f32 %v594, %v677
    %v679 = vpop.f32.mrb[0].mxu0
    %680 = vmatprep.mubr.f32.mxu0 0.0
    %681 = vmatmul.mubr.f32.gmra.mrb[0].mxu0 %v561
    %v682 = vpop.f32.mrb[0].mxu0
    %v683 = vadd.f32 %v594, %v682
    %v684 = vpop.f32.mrb[0].mxu0
    %685 = vmatprep.mubr.f32.mxu0 0.0
    %686 = vmatmul.mubr.f32.gmra.mrb[0].mxu0 %v562
    %v687 = vpop.f32.mrb[0].mxu0
    %v688 = vadd.f32 %v594, %v687
    %v689 = vpop.f32.mrb[0].mxu0
    %690 = vmatprep.mubr.f32.mxu0 0.0
    %691 = vmatmul.mubr.f32.gmra.mrb[0].mxu0 %v563
    %v692 = vpop.f32.mrb[0].mxu0
    %v693 = vadd.f32 %v594, %v692
    %v694 = vpop.f32.mrb[0].mxu0
    %695 = vmatprep.mubr.f32.mxu0 0.0
    %696 = vmatmul.mubr.f32.gmra.mrb[0].mxu0 %v564
    %v697 = vpop.f32.mrb[0].mxu0
    %v698 = vadd.f32 %v594, %v697
    %v699 = vpop.f32.mrb[0].mxu0
    %700 = vmatprep.mubr.f32.mxu0 0.0
    %701 = vmatmul.mubr.f32.gmra.mrb[0].mxu0 %v565
    %v702 = vpop.f32.mrb[0].mxu0
    %v703 = vadd.f32 %v594, %v702
    %v704 = vpop.f32.mrb[0].mxu0
    %705 = vmatprep.mubr.f32.mxu0 0.0
    %706 = vmatmul.mubr.f32.gmra.mrb[0].mxu0 %v566
    %v707 = vpop.f32.mrb[0].mxu0
    %v708 = vadd.f32 %v594, %v707
    %v709 = vpop.f32.mrb[0].mxu0
    %710 = vmatprep.mubr.f32.mxu0 0.0
    %711 = vmatmul.mubr.f32.gmra.mrb[0].mxu0 %v567
    %v712 = vpop.f32.mrb[0].mxu0
    %v713 = vadd.f32 %v594, %v712
    %v714 = vpop.f32.mrb[0].mxu0
    %715 = vmatprep.mubr.f32.mxu0 0.0
    %716 = vmatmul.mubr.f32.gmra.mrb[0].mxu0 %v568
    %v717 = vpop.f32.mrb[0].mxu0
    %v718 = vadd.f32 %v594, %v717
    %v719 = vpop.f32.mrb[0].mxu0
    %720 = vmatprep.mubr.f32.mxu0 0.0
    %721 = vmatmul.mubr.f32.gmra.mrb[0].mxu0 %v569
    %v722 = vpop.f32.mrb[0].mxu0
    %v723 = vadd.f32 %v594, %v722
    %v724 = vpop.f32.mrb[0].mxu0
    %725 = vmatprep.mubr.f32.mxu0 0.0
    %726 = vmatmul.mubr.f32.gmra.mrb[0].mxu0 %v570
    %v727 = vpop.f32.mrb[0].mxu0
    %v728 = vadd.f32 %v594, %v727
    %v729 = vpop.f32.mrb[0].mxu0
    %730 = vmatprep.mubr.f32.mxu0 0.0
    %731 = vmatmul.mubr.f32.gmra.mrb[0].mxu0 %v571
    %v732 = vpop.f32.mrb[0].mxu0
    %v733 = vadd.f32 %v594, %v732
    %v734 = vpop.f32.mrb[0].mxu0
    %735 = vmatprep.mubr.f32.mxu0 0.0
    %736 = vmatmul.mubr.f32.gmra.mrb[0].mxu0 %v572
    %v737 = vpop.f32.mrb[0].mxu0
    %v738 = vadd.f32 %v594, %v737
    %v739 = vpop.f32.mrb[0].mxu0
    %740 = vdwg.mxu0
    %vm741 = vcmp.gt.f32.partialorder %v663, 0.0
    %vm742 = vcmp.gt.f32.partialorder %v668, 0.0
    %vm743 = vcmp.gt.f32.partialorder %v673, 0.0
    %vm744 = vcmp.gt.f32.partialorder %v678, 0.0
    %vm745 = vcmp.gt.f32.partialorder %v683, 0.0
    %vm746 = vcmp.gt.f32.partialorder %v688, 0.0
    %vm747 = vcmp.gt.f32.partialorder %v693, 0.0
    %vm748 = vcmp.gt.f32.partialorder %v698, 0.0
    %vm749 = vcmp.gt.f32.partialorder %v703, 0.0
    %vm750 = vcmp.gt.f32.partialorder %v708, 0.0
    %vm751 = vcmp.gt.f32.partialorder %v713, 0.0
    %vm752 = vcmp.gt.f32.partialorder %v718, 0.0
    %vm753 = vcmp.gt.f32.partialorder %v723, 0.0
    %vm754 = vcmp.gt.f32.partialorder %v728, 0.0
    %vm755 = vcmp.gt.f32.partialorder %v733, 0.0
    %vm756 = vcmp.gt.f32.partialorder %v738, 0.0
    %v757 = vmul.f32 %v663, 0.01
    %v758 = vmul.f32 %v668, 0.01
    %v759 = vmul.f32 %v673, 0.01
    %v760 = vmul.f32 %v678, 0.01
    %v761 = vmul.f32 %v683, 0.01
    %v762 = vmul.f32 %v688, 0.01
    %v763 = vmul.f32 %v693, 0.01
    %v764 = vmul.f32 %v698, 0.01
    %v765 = vmul.f32 %v703, 0.01
    %v766 = vmul.f32 %v708, 0.01
    %v767 = vmul.f32 %v713, 0.01
    %v768 = vmul.f32 %v718, 0.01
    %v769 = vmul.f32 %v723, 0.01
    %v770 = vmul.f32 %v728, 0.01
    %v771 = vmul.f32 %v733, 0.01
    %v772 = vmul.f32 %v738, 0.01
    %v773 = vsel %vm741, %v663, %v757
    %v774 = vsel %vm742, %v668, %v758
    %v775 = vsel %vm743, %v673, %v759
    %v776 = vsel %vm744, %v678, %v760
    %v777 = vsel %vm745, %v683, %v761
    %v778 = vsel %vm746, %v688, %v762
    %v779 = vsel %vm747, %v693, %v763
    %v780 = vsel %vm748, %v698, %v764
    %v781 = vsel %vm749, %v703, %v765
    %v782 = vsel %vm750, %v708, %v766
    %v783 = vsel %vm751, %v713, %v767
    %v784 = vsel %vm752, %v718, %v768
    %v785 = vsel %vm753, %v723, %v769
    %v786 = vsel %vm754, %v728, %v770
    %v787 = vsel %vm755, %v733, %v771
    %v788 = vsel %vm756, %v738, %v772
    %v789 = vld [vmem:[#allocation2] sm:$0xff]
    %v790 = vld [vmem:[#allocation2 + $0x8] sm:$0xff]
    %v791 = vld [vmem:[#allocation2 + $0x10] sm:$0xff]
    %v792 = vld [vmem:[#allocation2 + $0x18] sm:$0xff]
    %v793 = vld [vmem:[#allocation2 + $0x20] sm:$0xff]
    %v794 = vld [vmem:[#allocation2 + $0x28] sm:$0xff]
    %v795 = vld [vmem:[#allocation2 + $0x30] sm:$0xff]
    %v796 = vld [vmem:[#allocation2 + $0x38] sm:$0xff]
    %v797 = vld [vmem:[#allocation2 + $0x40] sm:$0xff]
    %v798 = vld [vmem:[#allocation2 + $0x48] sm:$0xff]
    %v799 = vld [vmem:[#allocation2 + $0x50] sm:$0xff]
    %v800 = vld [vmem:[#allocation2 + $0x58] sm:$0xff]
    %v801 = vld [vmem:[#allocation2 + $0x60] sm:$0xff]
    %v802 = vld [vmem:[#allocation2 + $0x68] sm:$0xff]
    %v803 = vld [vmem:[#allocation2 + $0x70] sm:$0xff]
    %v804 = vld [vmem:[#allocation2 + $0x78] sm:$0xff]
    %v805 = vld [vmem:[%s8] sm:$0x1]
    %v807 = vlaneseq
    %v808 = vshrl.u32 %v807, 7
    %v809 = vsub.s32 0, %v808
    %v810 = vrot.slane %v805, %v809
    %812 = vmatprep.subr.mxu0 0.0
    %813 = vmatpush1.msra.mxu0 %v789
    %814 = vmatprep.subr.mxu0 0.0
    %815 = vmatpush1.msra.mxu0 %v790
    %816 = vmatprep.subr.mxu0 0.0
    %817 = vmatpush1.msra.mxu0 %v791
    %818 = vmatprep.subr.mxu0 0.0
    %819 = vmatpush1.msra.mxu0 %v792
    %820 = vmatprep.subr.mxu0 0.0
    %821 = vmatpush1.msra.mxu0 %v793
    %822 = vmatprep.subr.mxu0 0.0
    %823 = vmatpush1.msra.mxu0 %v794
    %824 = vmatprep.subr.mxu0 0.0
    %825 = vmatpush1.msra.mxu0 %v795
    %826 = vmatprep.subr.mxu0 0.0
    %827 = vmatpush1.msra.mxu0 %v796
    %828 = vmatprep.subr.mxu0 0.0
    %829 = vmatpush1.msra.mxu0 %v797
    %830 = vmatprep.subr.mxu0 0.0
    %831 = vmatpush1.msra.mxu0 %v798
    %832 = vmatprep.subr.mxu0 0.0
    %833 = vmatpush1.msra.mxu0 %v799
    %834 = vmatprep.subr.mxu0 0.0
    %835 = vmatpush1.msra.mxu0 %v800
    %836 = vmatprep.subr.mxu0 0.0
    %837 = vmatpush1.msra.mxu0 %v801
    %838 = vmatprep.subr.mxu0 0.0
    %839 = vmatpush1.msra.mxu0 %v802
    %840 = vmatprep.subr.mxu0 0.0
    %841 = vmatpush1.msra.mxu0 %v803
    %842 = vmatprep.subr.mxu0 0.0
    %843 = vmatpush1.msra.mxu0 %v804
    %844 = vmatprep.subr.mxu0 0.0
    %845 = vmatpush1.msra.mxu0 0.0
    %846 = vmatprep.subr.mxu0 0.0
    %847 = vmatpush1.msra.mxu0 0.0
    %848 = vmatprep.subr.mxu0 0.0
    %849 = vmatpush1.msra.mxu0 0.0
    %850 = vmatprep.subr.mxu0 0.0
    %851 = vmatpush1.msra.mxu0 0.0
    %852 = vmatprep.subr.mxu0 0.0
    %853 = vmatpush1.msra.mxu0 0.0
    %854 = vmatprep.subr.mxu0 0.0
    %855 = vmatpush1.msra.mxu0 0.0
    %856 = vmatprep.subr.mxu0 0.0
    %857 = vmatpush1.msra.mxu0 0.0
    %858 = vmatprep.subr.mxu0 0.0
    %859 = vmatpush1.msra.mxu0 0.0
    %860 = vmatprep.subr.mxu0 0.0
    %861 = vmatpush1.msra.mxu0 0.0
    %862 = vmatprep.subr.mxu0 0.0
    %863 = vmatpush1.msra.mxu0 0.0
    %864 = vmatprep.subr.mxu0 0.0
    %865 = vmatpush1.msra.mxu0 0.0
    %866 = vmatprep.subr.mxu0 0.0
    %867 = vmatpush1.msra.mxu0 0.0
    %868 = vmatprep.subr.mxu0 0.0
    %869 = vmatpush1.msra.mxu0 0.0
    %870 = vmatprep.subr.mxu0 0.0
    %871 = vmatpush1.msra.mxu0 0.0
    %872 = vmatprep.subr.mxu0 0.0
    %873 = vmatpush1.msra.mxu0 0.0
    %874 = vmatprep.subr.mxu0 0.0
    %875 = vmatpush1.msra.mxu0 0.0
    %876 = vmatprep.mubr.f32.mxu0 0.0
    %877 = vmatmul.mubr.f32.gmra.mrb[0].mxu0 %v773
    %v878 = vpop.f32.mrb[0].mxu0
    %v879 = vadd.f32 %v810, %v878
    %v880 = vpop.f32.mrb[0].mxu0
    %881 = vmatprep.mubr.f32.mxu0 0.0
    %882 = vmatmul.mubr.f32.gmra.mrb[0].mxu0 %v774
    %v883 = vpop.f32.mrb[0].mxu0
    %v884 = vadd.f32 %v810, %v883
    %v885 = vpop.f32.mrb[0].mxu0
    %886 = vmatprep.mubr.f32.mxu0 0.0
    %887 = vmatmul.mubr.f32.gmra.mrb[0].mxu0 %v775
    %v888 = vpop.f32.mrb[0].mxu0
    %v889 = vadd.f32 %v810, %v888
    %v890 = vpop.f32.mrb[0].mxu0
    %891 = vmatprep.mubr.f32.mxu0 0.0
    %892 = vmatmul.mubr.f32.gmra.mrb[0].mxu0 %v776
    %v893 = vpop.f32.mrb[0].mxu0
    %v894 = vadd.f32 %v810, %v893
    %v895 = vpop.f32.mrb[0].mxu0
    %896 = vmatprep.mubr.f32.mxu0 0.0
    %897 = vmatmul.mubr.f32.gmra.mrb[0].mxu0 %v777
    %v898 = vpop.f32.mrb[0].mxu0
    %v899 = vadd.f32 %v810, %v898
    %v900 = vpop.f32.mrb[0].mxu0
    %901 = vmatprep.mubr.f32.mxu0 0.0
    %902 = vmatmul.mubr.f32.gmra.mrb[0].mxu0 %v778
    %v903 = vpop.f32.mrb[0].mxu0
    %v904 = vadd.f32 %v810, %v903
    %v905 = vpop.f32.mrb[0].mxu0
    %906 = vmatprep.mubr.f32.mxu0 0.0
    %907 = vmatmul.mubr.f32.gmra.mrb[0].mxu0 %v779
    %v908 = vpop.f32.mrb[0].mxu0
    %v909 = vadd.f32 %v810, %v908
    %v910 = vpop.f32.mrb[0].mxu0
    %911 = vmatprep.mubr.f32.mxu0 0.0
    %912 = vmatmul.mubr.f32.gmra.mrb[0].mxu0 %v780
    %v913 = vpop.f32.mrb[0].mxu0
    %v914 = vadd.f32 %v810, %v913
    %v915 = vpop.f32.mrb[0].mxu0
    %916 = vmatprep.mubr.f32.mxu0 0.0
    %917 = vmatmul.mubr.f32.gmra.mrb[0].mxu0 %v781
    %v918 = vpop.f32.mrb[0].mxu0
    %v919 = vadd.f32 %v810, %v918
    %v920 = vpop.f32.mrb[0].mxu0
    %921 = vmatprep.mubr.f32.mxu0 0.0
    %922 = vmatmul.mubr.f32.gmra.mrb[0].mxu0 %v782
    %v923 = vpop.f32.mrb[0].mxu0
    %v924 = vadd.f32 %v810, %v923
    %v925 = vpop.f32.mrb[0].mxu0
    %926 = vmatprep.mubr.f32.mxu0 0.0
    %927 = vmatmul.mubr.f32.gmra.mrb[0].mxu0 %v783
    %v928 = vpop.f32.mrb[0].mxu0
    %v929 = vadd.f32 %v810, %v928
    %v930 = vpop.f32.mrb[0].mxu0
    %931 = vmatprep.mubr.f32.mxu0 0.0
    %932 = vmatmul.mubr.f32.gmra.mrb[0].mxu0 %v784
    %v933 = vpop.f32.mrb[0].mxu0
    %v934 = vadd.f32 %v810, %v933
    %v935 = vpop.f32.mrb[0].mxu0
    %936 = vmatprep.mubr.f32.mxu0 0.0
    %937 = vmatmul.mubr.f32.gmra.mrb[0].mxu0 %v785
    %v938 = vpop.f32.mrb[0].mxu0
    %v939 = vadd.f32 %v810, %v938
    %v940 = vpop.f32.mrb[0].mxu0
    %941 = vmatprep.mubr.f32.mxu0 0.0
    %942 = vmatmul.mubr.f32.gmra.mrb[0].mxu0 %v786
    %v943 = vpop.f32.mrb[0].mxu0
    %v944 = vadd.f32 %v810, %v943
    %v945 = vpop.f32.mrb[0].mxu0
    %946 = vmatprep.mubr.f32.mxu0 0.0
    %947 = vmatmul.mubr.f32.gmra.mrb[0].mxu0 %v787
    %v948 = vpop.f32.mrb[0].mxu0
    %v949 = vadd.f32 %v810, %v948
    %v950 = vpop.f32.mrb[0].mxu0
    %951 = vmatprep.mubr.f32.mxu0 0.0
    %952 = vmatmul.mubr.f32.gmra.mrb[0].mxu0 %v788
    %v953 = vpop.f32.mrb[0].mxu0
    %v954 = vadd.f32 %v810, %v953
    %v955 = vpop.f32.mrb[0].mxu0
    %956 = vdwg.mxu0
    %vm957 = vcmp.gt.f32.partialorder %v879, 0.0
    %vm958 = vcmp.gt.f32.partialorder %v884, 0.0
    %vm959 = vcmp.gt.f32.partialorder %v889, 0.0
    %vm960 = vcmp.gt.f32.partialorder %v894, 0.0
    %vm961 = vcmp.gt.f32.partialorder %v899, 0.0
    %vm962 = vcmp.gt.f32.partialorder %v904, 0.0
    %vm963 = vcmp.gt.f32.partialorder %v909, 0.0
    %vm964 = vcmp.gt.f32.partialorder %v914, 0.0
    %vm965 = vcmp.gt.f32.partialorder %v919, 0.0
    %vm966 = vcmp.gt.f32.partialorder %v924, 0.0
    %vm967 = vcmp.gt.f32.partialorder %v929, 0.0
    %vm968 = vcmp.gt.f32.partialorder %v934, 0.0
    %vm969 = vcmp.gt.f32.partialorder %v939, 0.0
    %vm970 = vcmp.gt.f32.partialorder %v944, 0.0
    %vm971 = vcmp.gt.f32.partialorder %v949, 0.0
    %vm972 = vcmp.gt.f32.partialorder %v954, 0.0
    %v973 = vmul.f32 %v879, 0.01
    %v974 = vmul.f32 %v884, 0.01
    %v975 = vmul.f32 %v889, 0.01
    %v976 = vmul.f32 %v894, 0.01
    %v977 = vmul.f32 %v899, 0.01
    %v978 = vmul.f32 %v904, 0.01
    %v979 = vmul.f32 %v909, 0.01
    %v980 = vmul.f32 %v914, 0.01
    %v981 = vmul.f32 %v919, 0.01
    %v982 = vmul.f32 %v924, 0.01
    %v983 = vmul.f32 %v929, 0.01
    %v984 = vmul.f32 %v934, 0.01
    %v985 = vmul.f32 %v939, 0.01
    %v986 = vmul.f32 %v944, 0.01
    %v987 = vmul.f32 %v949, 0.01
    %v988 = vmul.f32 %v954, 0.01
    %v989 = vsel %vm957, %v879, %v973
    %v990 = vsel %vm958, %v884, %v974
    %v991 = vsel %vm959, %v889, %v975
    %v992 = vsel %vm960, %v894, %v976
    %v993 = vsel %vm961, %v899, %v977
    %v994 = vsel %vm962, %v904, %v978
    %v995 = vsel %vm963, %v909, %v979
    %v996 = vsel %vm964, %v914, %v980
    %v997 = vsel %vm965, %v919, %v981
    %v998 = vsel %vm966, %v924, %v982
    %v999 = vsel %vm967, %v929, %v983
    %v1000 = vsel %vm968, %v934, %v984
    %v1001 = vsel %vm969, %v939, %v985
    %v1002 = vsel %vm970, %v944, %v986
    %v1003 = vsel %vm971, %v949, %v987
    %v1004 = vsel %vm972, %v954, %v988
    %v1005 = vld [vmem:[%s9] sm:$0xff]
    %v1006 = vld [vmem:[%s9 + $0x8] sm:$0xff]
    %v1007 = vld [vmem:[%s9 + $0x10] sm:$0xff]
    %v1008 = vld [vmem:[%s9 + $0x18] sm:$0xff]
    %v1009 = vld [vmem:[%s9 + $0x20] sm:$0xff]
    %v1010 = vld [vmem:[%s9 + $0x28] sm:$0xff]
    %v1011 = vld [vmem:[%s9 + $0x30] sm:$0xff]
    %v1012 = vld [vmem:[%s9 + $0x38] sm:$0xff]
    %v1013 = vld [vmem:[%s9 + $0x40] sm:$0xff]
    %v1014 = vld [vmem:[%s9 + $0x48] sm:$0xff]
    %v1015 = vld [vmem:[%s9 + $0x50] sm:$0xff]
    %v1016 = vld [vmem:[%s9 + $0x58] sm:$0xff]
    %v1017 = vld [vmem:[%s9 + $0x60] sm:$0xff]
    %v1018 = vld [vmem:[%s9 + $0x68] sm:$0xff]
    %v1019 = vld [vmem:[%s9 + $0x70] sm:$0xff]
    %v1020 = vld [vmem:[%s9 + $0x78] sm:$0xff]
    %v1021 = vld [vmem:[%s10] sm:$0x1]
    %v1023 = vlaneseq
    %v1024 = vshrl.u32 %v1023, 7
    %v1025 = vsub.s32 0, %v1024
    %v1026 = vrot.slane %v1021, %v1025
    %1028 = vmatprep.subr.mxu0 0.0
    %1029 = vmatpush1.msra.mxu0 %v1005
    %1030 = vmatprep.subr.mxu0 0.0
    %1031 = vmatpush1.msra.mxu0 %v1006
    %1032 = vmatprep.subr.mxu0 0.0
    %1033 = vmatpush1.msra.mxu0 %v1007
    %1034 = vmatprep.subr.mxu0 0.0
    %1035 = vmatpush1.msra.mxu0 %v1008
    %1036 = vmatprep.subr.mxu0 0.0
    %1037 = vmatpush1.msra.mxu0 %v1009
    %1038 = vmatprep.subr.mxu0 0.0
    %1039 = vmatpush1.msra.mxu0 %v1010
    %1040 = vmatprep.subr.mxu0 0.0
    %1041 = vmatpush1.msra.mxu0 %v1011
    %1042 = vmatprep.subr.mxu0 0.0
    %1043 = vmatpush1.msra.mxu0 %v1012
    %1044 = vmatprep.subr.mxu0 0.0
    %1045 = vmatpush1.msra.mxu0 %v1013
    %1046 = vmatprep.subr.mxu0 0.0
    %1047 = vmatpush1.msra.mxu0 %v1014
    %1048 = vmatprep.subr.mxu0 0.0
    %1049 = vmatpush1.msra.mxu0 %v1015
    %1050 = vmatprep.subr.mxu0 0.0
    %1051 = vmatpush1.msra.mxu0 %v1016
    %1052 = vmatprep.subr.mxu0 0.0
    %1053 = vmatpush1.msra.mxu0 %v1017
    %1054 = vmatprep.subr.mxu0 0.0
    %1055 = vmatpush1.msra.mxu0 %v1018
    %1056 = vmatprep.subr.mxu0 0.0
    %1057 = vmatpush1.msra.mxu0 %v1019
    %1058 = vmatprep.subr.mxu0 0.0
    %1059 = vmatpush1.msra.mxu0 %v1020
    %1060 = vmatprep.subr.mxu0 0.0
    %1061 = vmatpush1.msra.mxu0 0.0
    %1062 = vmatprep.subr.mxu0 0.0
    %1063 = vmatpush1.msra.mxu0 0.0
    %1064 = vmatprep.subr.mxu0 0.0
    %1065 = vmatpush1.msra.mxu0 0.0
    %1066 = vmatprep.subr.mxu0 0.0
    %1067 = vmatpush1.msra.mxu0 0.0
    %1068 = vmatprep.subr.mxu0 0.0
    %1069 = vmatpush1.msra.mxu0 0.0
    %1070 = vmatprep.subr.mxu0 0.0
    %1071 = vmatpush1.msra.mxu0 0.0
    %1072 = vmatprep.subr.mxu0 0.0
    %1073 = vmatpush1.msra.mxu0 0.0
    %1074 = vmatprep.subr.mxu0 0.0
    %1075 = vmatpush1.msra.mxu0 0.0
    %1076 = vmatprep.subr.mxu0 0.0
    %1077 = vmatpush1.msra.mxu0 0.0
    %1078 = vmatprep.subr.mxu0 0.0
    %1079 = vmatpush1.msra.mxu0 0.0
    %1080 = vmatprep.subr.mxu0 0.0
    %1081 = vmatpush1.msra.mxu0 0.0
    %1082 = vmatprep.subr.mxu0 0.0
    %1083 = vmatpush1.msra.mxu0 0.0
    %1084 = vmatprep.subr.mxu0 0.0
    %1085 = vmatpush1.msra.mxu0 0.0
    %1086 = vmatprep.subr.mxu0 0.0
    %1087 = vmatpush1.msra.mxu0 0.0
    %1088 = vmatprep.subr.mxu0 0.0
    %1089 = vmatpush1.msra.mxu0 0.0
    %1090 = vmatprep.subr.mxu0 0.0
    %1091 = vmatpush1.msra.mxu0 0.0
    %1092 = vmatprep.mubr.f32.mxu0 0.0
    %1093 = vmatmul.mubr.f32.gmra.mrb[0].mxu0 %v989
    %v1094 = vpop.f32.mrb[0].mxu0
    %v1095 = vadd.f32 %v1026, %v1094
    %v1096 = vpop.f32.mrb[0].mxu0
    %1097 = vmatprep.mubr.f32.mxu0 0.0
    %1098 = vmatmul.mubr.f32.gmra.mrb[0].mxu0 %v990
    %v1099 = vpop.f32.mrb[0].mxu0
    %v1100 = vadd.f32 %v1026, %v1099
    %v1101 = vpop.f32.mrb[0].mxu0
    %1102 = vmatprep.mubr.f32.mxu0 0.0
    %1103 = vmatmul.mubr.f32.gmra.mrb[0].mxu0 %v991
    %v1104 = vpop.f32.mrb[0].mxu0
    %v1105 = vadd.f32 %v1026, %v1104
    %v1106 = vpop.f32.mrb[0].mxu0
    %1107 = vmatprep.mubr.f32.mxu0 0.0
    %1108 = vmatmul.mubr.f32.gmra.mrb[0].mxu0 %v992
    %v1109 = vpop.f32.mrb[0].mxu0
    %v1110 = vadd.f32 %v1026, %v1109
    %v1111 = vpop.f32.mrb[0].mxu0
    %1112 = vmatprep.mubr.f32.mxu0 0.0
    %1113 = vmatmul.mubr.f32.gmra.mrb[0].mxu0 %v993
    %v1114 = vpop.f32.mrb[0].mxu0
    %v1115 = vadd.f32 %v1026, %v1114
    %v1116 = vpop.f32.mrb[0].mxu0
    %1117 = vmatprep.mubr.f32.mxu0 0.0
    %1118 = vmatmul.mubr.f32.gmra.mrb[0].mxu0 %v994
    %v1119 = vpop.f32.mrb[0].mxu0
    %v1120 = vadd.f32 %v1026, %v1119
    %v1121 = vpop.f32.mrb[0].mxu0
    %1122 = vmatprep.mubr.f32.mxu0 0.0
    %1123 = vmatmul.mubr.f32.gmra.mrb[0].mxu0 %v995
    %v1124 = vpop.f32.mrb[0].mxu0
    %v1125 = vadd.f32 %v1026, %v1124
    %v1126 = vpop.f32.mrb[0].mxu0
    %1127 = vmatprep.mubr.f32.mxu0 0.0
    %1128 = vmatmul.mubr.f32.gmra.mrb[0].mxu0 %v996
    %v1129 = vpop.f32.mrb[0].mxu0
    %v1130 = vadd.f32 %v1026, %v1129
    %v1131 = vpop.f32.mrb[0].mxu0
    %1132 = vmatprep.mubr.f32.mxu0 0.0
    %1133 = vmatmul.mubr.f32.gmra.mrb[0].mxu0 %v997
    %v1134 = vpop.f32.mrb[0].mxu0
    %v1135 = vadd.f32 %v1026, %v1134
    %v1136 = vpop.f32.mrb[0].mxu0
    %1137 = vmatprep.mubr.f32.mxu0 0.0
    %1138 = vmatmul.mubr.f32.gmra.mrb[0].mxu0 %v998
    %v1139 = vpop.f32.mrb[0].mxu0
    %v1140 = vadd.f32 %v1026, %v1139
    %v1141 = vpop.f32.mrb[0].mxu0
    %1142 = vmatprep.mubr.f32.mxu0 0.0
    %1143 = vmatmul.mubr.f32.gmra.mrb[0].mxu0 %v999
    %v1144 = vpop.f32.mrb[0].mxu0
    %v1145 = vadd.f32 %v1026, %v1144
    %v1146 = vpop.f32.mrb[0].mxu0
    %1147 = vmatprep.mubr.f32.mxu0 0.0
    %1148 = vmatmul.mubr.f32.gmra.mrb[0].mxu0 %v1000
    %v1149 = vpop.f32.mrb[0].mxu0
    %v1150 = vadd.f32 %v1026, %v1149
    %v1151 = vpop.f32.mrb[0].mxu0
    %1152 = vmatprep.mubr.f32.mxu0 0.0
    %1153 = vmatmul.mubr.f32.gmra.mrb[0].mxu0 %v1001
    %v1154 = vpop.f32.mrb[0].mxu0
    %v1155 = vadd.f32 %v1026, %v1154
    %v1156 = vpop.f32.mrb[0].mxu0
    %1157 = vmatprep.mubr.f32.mxu0 0.0
    %1158 = vmatmul.mubr.f32.gmra.mrb[0].mxu0 %v1002
    %v1159 = vpop.f32.mrb[0].mxu0
    %v1160 = vadd.f32 %v1026, %v1159
    %v1161 = vpop.f32.mrb[0].mxu0
    %1162 = vmatprep.mubr.f32.mxu0 0.0
    %1163 = vmatmul.mubr.f32.gmra.mrb[0].mxu0 %v1003
    %v1164 = vpop.f32.mrb[0].mxu0
    %v1165 = vadd.f32 %v1026, %v1164
    %v1166 = vpop.f32.mrb[0].mxu0
    %1167 = vmatprep.mubr.f32.mxu0 0.0
    %1168 = vmatmul.mubr.f32.gmra.mrb[0].mxu0 %v1004
    %v1169 = vpop.f32.mrb[0].mxu0
    %v1170 = vadd.f32 %v1026, %v1169
    %v1171 = vpop.f32.mrb[0].mxu0
    %1172 = vdwg.mxu0
    %vm1173 = vcmask 261120
    %1174 = vst.msk [vmem:[%s11] sm:$0xff] %vm1173, %v1095
    %1175 = vst.msk [vmem:[%s11 + $0x8] sm:$0xff] %vm1173, %v1100
    %1176 = vst.msk [vmem:[%s11 + $0x10] sm:$0xff] %vm1173, %v1105
    %1177 = vst.msk [vmem:[%s11 + $0x18] sm:$0xff] %vm1173, %v1110
    %1178 = vst.msk [vmem:[%s11 + $0x20] sm:$0xff] %vm1173, %v1115
    %1179 = vst.msk [vmem:[%s11 + $0x28] sm:$0xff] %vm1173, %v1120
    %1180 = vst.msk [vmem:[%s11 + $0x30] sm:$0xff] %vm1173, %v1125
    %1181 = vst.msk [vmem:[%s11 + $0x38] sm:$0xff] %vm1173, %v1130
    %1182 = vst.msk [vmem:[%s11 + $0x40] sm:$0xff] %vm1173, %v1135
    %1183 = vst.msk [vmem:[%s11 + $0x48] sm:$0xff] %vm1173, %v1140
    %1184 = vst.msk [vmem:[%s11 + $0x50] sm:$0xff] %vm1173, %v1145
    %1185 = vst.msk [vmem:[%s11 + $0x58] sm:$0xff] %vm1173, %v1150
    %1186 = vst.msk [vmem:[%s11 + $0x60] sm:$0xff] %vm1173, %v1155
    %1187 = vst.msk [vmem:[%s11 + $0x68] sm:$0xff] %vm1173, %v1160
    %1188 = vst.msk [vmem:[%s11 + $0x70] sm:$0xff] %vm1173, %v1165
    %1189 = vst.msk [vmem:[%s11 + $0x78] sm:$0xff] %vm1173, %v1170
    // Predicated region
    $region50: #{tpu_custom_call.1} parent=1 // pred_check
      _
    $region51: #{tpu_custom_call.1} parent=1 // pred_check_branch
      %1191 = sbr.rel (0) target = $region53
    $region52: #{tpu_custom_call.1} parent=1 // pred_region
      _
    $region53: #{tpu_custom_call.1} parent=1 // pred_fallthru
      _
    // Predicated region
    $region54: #{tpu_custom_call.1} parent=1 // pred_check
      _
    $region55: #{tpu_custom_call.1} parent=1 // pred_check_branch
      %1193 = sbr.rel (0) target = $region57
    $region56: #{tpu_custom_call.1} parent=1 // pred_region
      _
    $region57: #{tpu_custom_call.1} parent=1 // pred_fallthru
      _
    %1194 = vsyncpa [#allocation3], 1

</llo_original>
